<compile_context>
chip_gen: v7x
topology: tpu7x:2x2x1
jax: 0.10.0
libtpu: 0.0.40
codegen_flags: <defaults>
</compile_context>

<pallas_src>
import functools

import numpy as np
import jax
import jax.numpy as jnp
from jax.experimental import pallas as pl
from jax.experimental.pallas import tpu as pltpu

LOG_STD_MAX = 2.0
LOG_STD_MIN = -20.0
EPS = 1e-8
LOG_2PI = float(np.log(2.0 * np.pi))

_SUBLANE = 8
_MAX_TILE = 4096


def _round_up(n, m):
    return ((n + m - 1) // m) * m


def _gaussian_policy_kernel(x_ref, noise_ref,
                            w1_ref, b1_ref, w2_ref, b2_ref,
                            wh_ref, bh_ref,
                            out_ref, *, out_dim, slab_w):
    a = out_dim
    x = x_ref[...]
    noise = noise_ref[...]

    # MLP trunk: Linear -> ReLU -> Linear -> ReLU (output_activation=ReLU).
    h = jnp.dot(x, w1_ref[...], preferred_element_type=jnp.float32) + b1_ref[...]
    h = jnp.maximum(h, 0.0)
    h = jnp.dot(h, w2_ref[...], preferred_element_type=jnp.float32) + b2_ref[...]
    h = jnp.maximum(h, 0.0)

    # Fused heads: one [h2, 2*out_dim] matmul instead of two tiny N=out_dim ones.
    heads = jnp.dot(h, wh_ref[...], preferred_element_type=jnp.float32) + bh_ref[...]
    th = jnp.tanh(heads)                      # one EUP pass: tanh(mu) and log_std squash
    mu = heads[:, :a]
    mu_t = th[:, :a]

    # Rescale squashed log_std into [LOG_STD_MIN, LOG_STD_MAX].
    log_std = LOG_STD_MIN + 0.5 * (LOG_STD_MAX - LOG_STD_MIN) * (th[:, a:2 * a] + 1.0)
    std = jnp.exp(log_std)

    # Reparameterized sample (noise supplied from host for determinism).
    pi = mu + noise * std
    pi_t = jnp.tanh(pi)

    # gaussian_likelihood(pi, mu, log_std): (pi - mu)/std == noise exactly by the
    # reparameterization identity, so z == noise (no reciprocal needed).
    pre_sum = -0.5 * (noise * noise + 2.0 * log_std + LOG_2PI)

    # apply_squashing_func: matches torch forward exactly:
    # log(clip(1 - tanh(pi)^2, 0, 1) + 1e-6).
    log_det = jnp.log(jnp.clip(1.0 - pi_t * pi_t, 0.0, 1.0) + 1e-6)

    # Fused cross-lane reduction (one XLU reduce instead of two).
    logp = jnp.sum(pre_sum - log_det, axis=1, keepdims=True)

    # Assemble the output row in registers and store once.
    parts = [mu_t, pi_t, logp]
    pad = slab_w - (2 * a + 1)
    if pad:
        parts.append(jnp.zeros((x.shape[0], pad), jnp.float32))
    out_ref[...] = jnp.concatenate(parts, axis=1)


def gaussian_policy_forward(x, params, noise, *, block_b=None):
    """x: [B, in_dim] f32; noise: [B, out_dim] f32 (standard normal).

    params = (w1, b1, w2, b2, w_head, b_head); weights stored [in, out]
    (transposed vs. PyTorch) with the mu / log_std heads fused along out axis.
    Returns (mu, pi, logp_pi) matching GaussianPolicy.forward.
    """
    w1, b1, w2, b2, w_head, b_head = params
    B, in_dim = x.shape
    a = noise.shape[1]
    h1 = w1.shape[1]
    h2 = w2.shape[1]
    assert w_head.shape == (h2, 2 * a)
    assert 2 * a + 1 <= 128, "slab packing assumes 2*out_dim+1 <= 128"

    # Batch tile: as large as possible (amortizes the ~0.35us per-grid-step
    # overhead), but with >= 2 grid steps whenever the batch allows it so the
    # "parallel" batch axis can shard across both v7x TensorCores. Tile derived
    # from cdiv(B, n_tiles) so padding is at most a handful of rows.
    if block_b is None:
        n_tiles = max(pl.cdiv(B, _MAX_TILE), 2 if B >= 2 * _SUBLANE else 1)
        block_b = _round_up(pl.cdiv(B, n_tiles), _SUBLANE)
    block_b = _round_up(block_b, _SUBLANE)
    b_pad = _round_up(B, block_b)
    if b_pad != B:
        pad = b_pad - B
        x = jnp.pad(x, ((0, pad), (0, 0)))
        noise = jnp.pad(noise, ((0, pad), (0, 0)))

    # Narrow output slab (full-array last dim, so the BlockSpec stays legal):
    # [mu_t | pi_t | logp | zero pad] -> minimal HBM writeback.
    slab_w = _round_up(2 * a + 1, _SUBLANE)
    grid = (b_pad // block_b,)

    # Row-blocked specs for activations; weights use a constant index_map so the
    # same block is reused (no re-DMA) across all batch tiles.
    def row_spec(width):
        return pl.BlockSpec((block_b, width), lambda i: (i, 0))

    def full_spec(arr):
        return pl.BlockSpec(arr.shape, lambda i: (0, 0))

    weight_elems = in_dim * h1 + h1 + h1 * h2 + h2 + h2 * 2 * a + 2 * a
    cost = pl.CostEstimate(
        flops=2 * b_pad * (in_dim * h1 + h1 * h2 + h2 * 2 * a),
        transcendentals=5 * b_pad * a,
        bytes_accessed=4 * (b_pad * (in_dim + a + slab_w) + weight_elems),
    )

    # VMEM budget: double-buffered I/O tiles + weights + trunk intermediates.
    vmem_needed = 4 * (2 * block_b * (in_dim + a + slab_w)
                       + block_b * (h1 + h2 + 2 * a)
                       + 2 * weight_elems)
    compiler_kwargs = dict(dimension_semantics=("parallel",))
    if vmem_needed > 16 * 1024 * 1024:  # above v5e's default scoped limit
        # Cap at 40 MiB so there is headroom even on v7x's 64 MiB physical VMEM.
        compiler_kwargs["vmem_limit_bytes"] = min(
            _round_up(2 * vmem_needed, 1 << 20), 40 * 1024 * 1024)

    slab = pl.pallas_call(
        functools.partial(_gaussian_policy_kernel, out_dim=a, slab_w=slab_w),
        grid=grid,
        out_shape=jax.ShapeDtypeStruct((b_pad, slab_w), jnp.float32),
        in_specs=[row_spec(in_dim), row_spec(a),
                  full_spec(w1), full_spec(b1),
                  full_spec(w2), full_spec(b2),
                  full_spec(w_head), full_spec(b_head)],
        out_specs=pl.BlockSpec((block_b, slab_w), lambda i: (i, 0)),
        compiler_params=pltpu.CompilerParams(**compiler_kwargs),
        cost_estimate=cost,
    )(x, noise, w1, b1, w2, b2, w_head, b_head)

    mu = slab[:B, :a]
    pi = slab[:B, a:2 * a]
    logp = slab[:B, 2 * a:2 * a + 1]
    return mu, pi, logp


def _xavier_normal(key, fan_in, fan_out):
    # matches torch.nn.init.xavier_normal_ (gain=1); stored as [in, out]
    std = float(np.sqrt(2.0 / (fan_in + fan_out)))
    return jax.random.normal(key, (fan_in, fan_out), dtype=jnp.float32) * std


def make_params(key, in_dim, hidden_sizes, out_dim):
    """Xavier-normal weights / zero biases, mirroring the PyTorch module.
    The mu and log_std heads are initialized separately (same fan-in/out as the
    torch layers) and then packed into a single fused head weight/bias."""
    h1, h2 = hidden_sizes
    k1, k2, k3, k4 = jax.random.split(key, 4)
    w1 = _xavier_normal(k1, in_dim, h1)
    b1 = jnp.zeros((1, h1), jnp.float32)
    w2 = _xavier_normal(k2, h1, h2)
    b2 = jnp.zeros((1, h2), jnp.float32)
    wmu = _xavier_normal(k3, h2, out_dim)
    wls = _xavier_normal(k4, h2, out_dim)
    w_head = jnp.concatenate([wmu, wls], axis=1)      # [h2, 2*out_dim]
    b_head = jnp.zeros((1, 2 * out_dim), jnp.float32)
    return (w1, b1, w2, b2, w_head, b_head)


def _reference_forward(x, params, noise):
    """Pure-JAX reimplementation using the original torch formulas."""
    w1, b1, w2, b2, w_head, b_head = params
    a = noise.shape[1]
    h = jnp.maximum(x @ w1 + b1, 0.0)
    h = jnp.maximum(h @ w2 + b2, 0.0)
    heads = h @ w_head + b_head
    mu = heads[:, :a]
    log_std = LOG_STD_MIN + 0.5 * (LOG_STD_MAX - LOG_STD_MIN) * (
        jnp.tanh(heads[:, a:]) + 1.0)
    std = jnp.exp(log_std)
    pi = mu + noise * std
    pre_sum = -0.5 * (((pi - mu) / (std + EPS)) ** 2 + 2.0 * log_std + LOG_2PI)
    logp = jnp.sum(pre_sum, axis=1, keepdims=True)
    mu_t = jnp.tanh(mu)
    pi_t = jnp.tanh(pi)
    clipped = jnp.clip(1.0 - pi_t * pi_t, 0.0, 1.0)
    logp = logp - jnp.sum(jnp.log(clipped + 1e-6), axis=1, keepdims=True)
    return mu_t, pi_t, logp


if __name__ == "__main__":
    in_dim, hidden_sizes, out_dim, batch = 16, [32, 32], 8, 4

    key = jax.random.PRNGKey(0)
    k_param, k_x, k_noise = jax.random.split(key, 3)

    params = make_params(k_param, in_dim, hidden_sizes, out_dim)
    x = jax.random.normal(k_x, (batch, in_dim), dtype=jnp.float32)
    noise = jax.random.normal(k_noise, (batch, out_dim), dtype=jnp.float32)

    mu, pi, logp_pi = gaussian_policy_forward(x, params, noise)
    jax.block_until_ready((mu, pi, logp_pi))

    assert mu.shape == (batch, out_dim)
    assert pi.shape == (batch, out_dim)
    assert logp_pi.shape == (batch, 1)
    assert bool(jnp.all(jnp.isfinite(mu))) and bool(jnp.all(jnp.isfinite(pi)))
    assert bool(jnp.all(jnp.isfinite(logp_pi)))

    # Numerical check vs. the torch-formula reference. Tolerances now only cover
    # MXU/XLA matmul precision differences and the (exact-identity) drop of the
    # EPS term in the likelihood; much tighter than before.
    mu_r, pi_r, logp_r = _reference_forward(x, params, noise)
    np.testing.assert_allclose(np.asarray(mu), np.asarray(mu_r), rtol=2e-2, atol=2e-2)
    np.testing.assert_allclose(np.asarray(pi), np.asarray(pi_r), rtol=2e-2, atol=2e-2)
    np.testing.assert_allclose(np.asarray(logp_pi), np.asarray(logp_r),
                               rtol=1e-2, atol=1e-1)

    print("KERNEL_OK")
</pallas_src>

<mosaic_0001>
module attributes {stable_mosaic.version = 11 : i64} {
  func.func @_gaussian_policy_kernel(%arg0: i32, %arg1: memref<8x16xf32, #tpu.memory_space<vmem>>, %arg2: memref<8x8xf32, #tpu.memory_space<vmem>>, %arg3: memref<16x32xf32, #tpu.memory_space<vmem>>, %arg4: memref<1x32xf32, #tpu.memory_space<vmem>>, %arg5: memref<32x32xf32, #tpu.memory_space<vmem>>, %arg6: memref<1x32xf32, #tpu.memory_space<vmem>>, %arg7: memref<32x16xf32, #tpu.memory_space<vmem>>, %arg8: memref<1x16xf32, #tpu.memory_space<vmem>>, %arg9: memref<8x24xf32, #tpu.memory_space<vmem>>) attributes {dimension_semantics = [#tpu.dimension_semantics<parallel>], iteration_bounds = array<i64: 1>, scalar_prefetch = 0 : i64, scratch_operands = 0 : i64, tpu.core_type = #tpu.core_type<tc>, window_params = [{transform_indices = @transform_0, window_bounds = array<i64: 8, 16>}, {transform_indices = @transform_1, window_bounds = array<i64: 8, 8>}, {pipeline_mode = #tpu.pipeline_mode<synchronous>, transform_indices = @transform_2, window_bounds = array<i64: 16, 32>}, {pipeline_mode = #tpu.pipeline_mode<synchronous>, transform_indices = @transform_3, window_bounds = array<i64: 1, 32>}, {pipeline_mode = #tpu.pipeline_mode<synchronous>, transform_indices = @transform_4, window_bounds = array<i64: 32, 32>}, {pipeline_mode = #tpu.pipeline_mode<synchronous>, transform_indices = @transform_5, window_bounds = array<i64: 1, 32>}, {pipeline_mode = #tpu.pipeline_mode<synchronous>, transform_indices = @transform_6, window_bounds = array<i64: 32, 16>}, {pipeline_mode = #tpu.pipeline_mode<synchronous>, transform_indices = @transform_7, window_bounds = array<i64: 1, 16>}, {transform_indices = @transform_8, window_bounds = array<i64: 8, 24>}]} {
    %c0 = arith.constant 0 : index
    %c0_0 = arith.constant 0 : index
    %0 = vector.load %arg1[%c0, %c0_0] : memref<8x16xf32, #tpu.memory_space<vmem>>, vector<8x16xf32>
    %c0_1 = arith.constant 0 : index
    %c0_2 = arith.constant 0 : index
    %1 = vector.load %arg2[%c0_1, %c0_2] : memref<8x8xf32, #tpu.memory_space<vmem>>, vector<8x8xf32>
    %c0_3 = arith.constant 0 : index
    %c0_4 = arith.constant 0 : index
    %2 = vector.load %arg3[%c0_3, %c0_4] : memref<16x32xf32, #tpu.memory_space<vmem>>, vector<16x32xf32>
    %cst = arith.constant dense<0.000000e+00> : vector<8x32xf32>
    %3 = tpu.matmul %0, %2, %cst {dimension_numbers = #tpu.dot_dimension_numbers<[1], [0], [0], [1], [0, 0, 1, 1], [], []>} : vector<8x16xf32>, vector<16x32xf32>, vector<8x32xf32> -> vector<8x32xf32>
    %c0_5 = arith.constant 0 : index
    %c0_6 = arith.constant 0 : index
    %4 = vector.load %arg4[%c0_5, %c0_6] : memref<1x32xf32, #tpu.memory_space<vmem>>, vector<1x32xf32>
    %5 = vector.broadcast %4 : vector<1x32xf32> to vector<8x32xf32>
    %6 = arith.addf %3, %5 : vector<8x32xf32>
    %cst_7 = arith.constant 0.000000e+00 : f32
    %7 = vector.broadcast %cst_7 : f32 to vector<8x32xf32>
    %8 = arith.maximumf %6, %7 : vector<8x32xf32>
    %c0_8 = arith.constant 0 : index
    %c0_9 = arith.constant 0 : index
    %9 = vector.load %arg5[%c0_8, %c0_9] : memref<32x32xf32, #tpu.memory_space<vmem>>, vector<32x32xf32>
    %cst_10 = arith.constant dense<0.000000e+00> : vector<8x32xf32>
    %10 = tpu.matmul %8, %9, %cst_10 {dimension_numbers = #tpu.dot_dimension_numbers<[1], [0], [0], [1], [0, 0, 1, 1], [], []>} : vector<8x32xf32>, vector<32x32xf32>, vector<8x32xf32> -> vector<8x32xf32>
    %c0_11 = arith.constant 0 : index
    %c0_12 = arith.constant 0 : index
    %11 = vector.load %arg6[%c0_11, %c0_12] : memref<1x32xf32, #tpu.memory_space<vmem>>, vector<1x32xf32>
    %12 = vector.broadcast %11 : vector<1x32xf32> to vector<8x32xf32>
    %13 = arith.addf %10, %12 : vector<8x32xf32>
    %cst_13 = arith.constant 0.000000e+00 : f32
    %14 = vector.broadcast %cst_13 : f32 to vector<8x32xf32>
    %15 = arith.maximumf %13, %14 : vector<8x32xf32>
    %c0_14 = arith.constant 0 : index
    %c0_15 = arith.constant 0 : index
    %16 = vector.load %arg7[%c0_14, %c0_15] : memref<32x16xf32, #tpu.memory_space<vmem>>, vector<32x16xf32>
    %cst_16 = arith.constant dense<0.000000e+00> : vector<8x16xf32>
    %17 = tpu.matmul %15, %16, %cst_16 {dimension_numbers = #tpu.dot_dimension_numbers<[1], [0], [0], [1], [0, 0, 1, 1], [], []>} : vector<8x32xf32>, vector<32x16xf32>, vector<8x16xf32> -> vector<8x16xf32>
    %c0_17 = arith.constant 0 : index
    %c0_18 = arith.constant 0 : index
    %18 = vector.load %arg8[%c0_17, %c0_18] : memref<1x16xf32, #tpu.memory_space<vmem>>, vector<1x16xf32>
    %19 = vector.broadcast %18 : vector<1x16xf32> to vector<8x16xf32>
    %20 = arith.addf %17, %19 : vector<8x16xf32>
    %21 = math.tanh %20 : vector<8x16xf32>
    %22 = vector.extract_strided_slice %20 {offsets = [0, 0], sizes = [8, 8], strides = [1, 1]} : vector<8x16xf32> to vector<8x8xf32>
    %23 = vector.extract_strided_slice %21 {offsets = [0, 0], sizes = [8, 8], strides = [1, 1]} : vector<8x16xf32> to vector<8x8xf32>
    %24 = vector.extract_strided_slice %21 {offsets = [0, 8], sizes = [8, 8], strides = [1, 1]} : vector<8x16xf32> to vector<8x8xf32>
    %cst_19 = arith.constant 1.000000e+00 : f32
    %25 = vector.broadcast %cst_19 : f32 to vector<8x8xf32>
    %26 = arith.addf %24, %25 : vector<8x8xf32>
    %cst_20 = arith.constant 1.100000e+01 : f32
    %27 = vector.broadcast %cst_20 : f32 to vector<8x8xf32>
    %28 = arith.mulf %27, %26 : vector<8x8xf32>
    %cst_21 = arith.constant -2.000000e+01 : f32
    %29 = vector.broadcast %cst_21 : f32 to vector<8x8xf32>
    %30 = arith.addf %29, %28 : vector<8x8xf32>
    %31 = math.exp %30 : vector<8x8xf32>
    %32 = arith.mulf %1, %31 : vector<8x8xf32>
    %33 = arith.addf %22, %32 : vector<8x8xf32>
    %34 = math.tanh %33 : vector<8x8xf32>
    %35 = arith.mulf %1, %1 : vector<8x8xf32>
    %cst_22 = arith.constant 2.000000e+00 : f32
    %36 = vector.broadcast %cst_22 : f32 to vector<8x8xf32>
    %37 = arith.mulf %36, %30 : vector<8x8xf32>
    %38 = arith.addf %35, %37 : vector<8x8xf32>
    %cst_23 = arith.constant 1.83787704 : f32
    %39 = vector.broadcast %cst_23 : f32 to vector<8x8xf32>
    %40 = arith.addf %38, %39 : vector<8x8xf32>
    %cst_24 = arith.constant -5.000000e-01 : f32
    %41 = vector.broadcast %cst_24 : f32 to vector<8x8xf32>
    %42 = arith.mulf %41, %40 : vector<8x8xf32>
    %43 = arith.mulf %34, %34 : vector<8x8xf32>
    %cst_25 = arith.constant 1.000000e+00 : f32
    %44 = vector.broadcast %cst_25 : f32 to vector<8x8xf32>
    %45 = arith.subf %44, %43 : vector<8x8xf32>
    %cst_26 = arith.constant 0.000000e+00 : f32
    %cst_27 = arith.constant 1.000000e+00 : f32
    %46 = vector.broadcast %cst_26 : f32 to vector<8x8xf32>
    %47 = arith.maximumf %46, %45 : vector<8x8xf32>
    %48 = vector.broadcast %cst_27 : f32 to vector<8x8xf32>
    %49 = arith.minimumf %48, %47 : vector<8x8xf32>
    %cst_28 = arith.constant 9.99999997E-7 : f32
    %50 = vector.broadcast %cst_28 : f32 to vector<8x8xf32>
    %51 = arith.addf %49, %50 : vector<8x8xf32>
    %52 = math.log %51 : vector<8x8xf32>
    %53 = arith.subf %42, %52 : vector<8x8xf32>
    %cst_29 = arith.constant dense<0.000000e+00> : vector<8xf32>
    %54 = vector.multi_reduction <add>, %53, %cst_29 [1] : vector<8x8xf32> to vector<8xf32>
    %55 = vector.shape_cast %54 : vector<8xf32> to vector<8x1xf32>
    %cst_30 = arith.constant 0.000000e+00 : f32
    %56 = vector.broadcast %cst_30 : f32 to vector<8x7xf32>
    %57 = tpu.concatenate %23, %34, %55, %56 in 1 : vector<8x8xf32>, vector<8x8xf32>, vector<8x1xf32>, vector<8x7xf32> -> vector<8x24xf32>
    %c0_31 = arith.constant 0 : index
    %c0_32 = arith.constant 0 : index
    %58 = vector.load %arg9[%c0_31, %c0_32] : memref<8x24xf32, #tpu.memory_space<vmem>>, vector<8x24xf32>
    tpu.vector_store %arg9[%c0_31, %c0_32], %57 {strides = array<i32>} : memref<8x24xf32, #tpu.memory_space<vmem>>, vector<8x24xf32>,
    return
  }
  func.func @transform_0(%arg0: i32) -> (i32, i32) {
    %c0_i32 = arith.constant 0 : i32
    %c0_i32_0 = arith.constant 0 : i32
    return %arg0, %c0_i32 : i32, i32
  }
  func.func @transform_1(%arg0: i32) -> (i32, i32) {
    %c0_i32 = arith.constant 0 : i32
    %c0_i32_0 = arith.constant 0 : i32
    return %arg0, %c0_i32 : i32, i32
  }
  func.func @transform_2(%arg0: i32) -> (i32, i32) {
    %c0_i32 = arith.constant 0 : i32
    %c0_i32_0 = arith.constant 0 : i32
    %c0_i32_1 = arith.constant 0 : i32
    return %c0_i32, %c0_i32_0 : i32, i32
  }
  func.func @transform_3(%arg0: i32) -> (i32, i32) {
    %c0_i32 = arith.constant 0 : i32
    %c0_i32_0 = arith.constant 0 : i32
    %c0_i32_1 = arith.constant 0 : i32
    return %c0_i32, %c0_i32_0 : i32, i32
  }
  func.func @transform_4(%arg0: i32) -> (i32, i32) {
    %c0_i32 = arith.constant 0 : i32
    %c0_i32_0 = arith.constant 0 : i32
    %c0_i32_1 = arith.constant 0 : i32
    return %c0_i32, %c0_i32_0 : i32, i32
  }
  func.func @transform_5(%arg0: i32) -> (i32, i32) {
    %c0_i32 = arith.constant 0 : i32
    %c0_i32_0 = arith.constant 0 : i32
    %c0_i32_1 = arith.constant 0 : i32
    return %c0_i32, %c0_i32_0 : i32, i32
  }
  func.func @transform_6(%arg0: i32) -> (i32, i32) {
    %c0_i32 = arith.constant 0 : i32
    %c0_i32_0 = arith.constant 0 : i32
    %c0_i32_1 = arith.constant 0 : i32
    return %c0_i32, %c0_i32_0 : i32, i32
  }
  func.func @transform_7(%arg0: i32) -> (i32, i32) {
    %c0_i32 = arith.constant 0 : i32
    %c0_i32_0 = arith.constant 0 : i32
    %c0_i32_1 = arith.constant 0 : i32
    return %c0_i32, %c0_i32_0 : i32, i32
  }
  func.func @transform_8(%arg0: i32) -> (i32, i32) {
    %c0_i32 = arith.constant 0 : i32
    %c0_i32_0 = arith.constant 0 : i32
    return %arg0, %c0_i32 : i32, i32
  }
}

</mosaic_0001>

<llo_original>
// kernel: tpu_custom_call.1
$region0: #{tpu_custom_call.1}
  #allocation0 [shape = 'u32[]', space=smem, size = 0x4, offset = 0x4, fixed_abs, tag = 'smem constant byte address 0x4 - core index']
  #allocation1 [shape = 'u32[144,128]{1,0:T(1,128)}', space=vmem, size = 0x12000, scoped, tag = 'internal scratch']
  %s0 = inlined_call_operand.hbm [shape: f32[8,16], index: 0, kind: input, shape index: {}]
  %s1 = inlined_call_operand.hbm [shape: f32[8,8], index: 1, kind: input, shape index: {}]
  %s2 = inlined_call_operand.vmem [shape: f32[16,32], index: 2, kind: input, shape index: {}]
  %s3 = inlined_call_operand.vmem [shape: f32[1,32], index: 3, kind: input, shape index: {}]
  %s4 = inlined_call_operand.vmem [shape: f32[32,32], index: 4, kind: input, shape index: {}]
  %s5 = inlined_call_operand.vmem [shape: f32[1,32], index: 5, kind: input, shape index: {}]
  %s6 = inlined_call_operand.vmem [shape: f32[32,16], index: 6, kind: input, shape index: {}]
  %s7 = inlined_call_operand.vmem [shape: f32[1,16], index: 7, kind: input, shape index: {}]
  %s8 = inlined_call_operand.hbm [shape: f32[8,24], index: 8, kind: output, shape index: {}]
  %s9 = sld [smem:[#allocation0]]
  $region50: #{tpu_custom_call.1} parent=0
    _
  %s11 = ssub.s32 1, %s9
  %s12 = scalar_select 0, %s11, %s9
  $region1: #{tpu_custom_call.1} parent=0
    #allocation2 [shape = 'u8[4096]{0}', space=vmem, size = 0x1000, scoped, tag = 'input window, operand 0, single buffered']
    #allocation3 [shape = 's32[1]{0}', space=sflag, size = 0x4, scoped, tag = 'scoped memory for tpu_custom_call.1']
    #allocation4 [shape = 's32[1]{0}', space=sflag, size = 0x4, scoped, tag = 'scoped memory for tpu_custom_call.1']
    #allocation5 [shape = 'u8[4096]{0}', space=vmem, size = 0x1000, scoped, tag = 'input window, operand 1, single buffered']
    #allocation6 [shape = 's32[1]{0}', space=sflag, size = 0x4, scoped, tag = 'scoped memory for tpu_custom_call.1']
    #allocation7 [shape = 'u8[4096]{0}', space=vmem, size = 0x1000, scoped, tag = 'output window, operand 0, single buffered']
    %13 = vsyncpa [#allocation3], 0
    %14 = vsyncpa [#allocation6], 0
    %15 = vsyncpa [#allocation4], 0
    // Predicated region
    $region2: #{tpu_custom_call.1} parent=1 // pred_check
      _
    $region3: #{tpu_custom_call.1} parent=1 // pred_check_branch
      %17 = sbr.rel (0) target = $region5
    $region4: #{tpu_custom_call.1} parent=1 // pred_region
      %s19 = ssub.s32 128, 128
      %20 = vsyncadd [#allocation3], %s19
      %s22 = sshll.u32 [#allocation2], 4
      %s23 = int_to_ptr.vmem [resolvable:$true] %s22
      %25 = dma.hbm_to_vmem [thread:$0]  %s0, 128, %s23, [#allocation3]
    $region5: #{tpu_custom_call.1} parent=1 // pred_fallthru
      _
    // Predicated region
    $region6: #{tpu_custom_call.1} parent=1 // pred_check
      _
    $region7: #{tpu_custom_call.1} parent=1 // pred_check_branch
      %27 = sbr.rel (0) target = $region9
    $region8: #{tpu_custom_call.1} parent=1 // pred_region
      %s29 = ssub.s32 128, 128
      %30 = vsyncadd [#allocation6], %s29
      %s32 = sshll.u32 [#allocation5], 4
      %s33 = int_to_ptr.vmem [resolvable:$true] %s32
      %35 = dma.hbm_to_vmem [thread:$0]  %s1, 128, %s33, [#allocation6]
    $region9: #{tpu_custom_call.1} parent=1 // pred_fallthru
      _
    // Predicated region
    $region10: #{tpu_custom_call.1} parent=1 // pred_check
      _
    $region11: #{tpu_custom_call.1} parent=1 // pred_check_branch
      %37 = sbr.rel (0) target = $region13
    $region12: #{tpu_custom_call.1} parent=1 // pred_region
      _
    $region13: #{tpu_custom_call.1} parent=1 // pred_fallthru
      _
    // Predicated region
    $region14: #{tpu_custom_call.1} parent=1 // pred_check
      _
    $region15: #{tpu_custom_call.1} parent=1 // pred_check_branch
      %39 = sbr.rel (0) target = $region17
    $region16: #{tpu_custom_call.1} parent=1 // pred_region
      _
    $region17: #{tpu_custom_call.1} parent=1 // pred_fallthru
      _
    // Predicated region
    $region18: #{tpu_custom_call.1} parent=1 // pred_check
      _
    $region19: #{tpu_custom_call.1} parent=1 // pred_check_branch
      %41 = sbr.rel (0) target = $region21
    $region20: #{tpu_custom_call.1} parent=1 // pred_region
      _
    $region21: #{tpu_custom_call.1} parent=1 // pred_fallthru
      _
    // Predicated region
    $region22: #{tpu_custom_call.1} parent=1 // pred_check
      _
    $region23: #{tpu_custom_call.1} parent=1 // pred_check_branch
      %43 = sbr.rel (0) target = $region25
    $region24: #{tpu_custom_call.1} parent=1 // pred_region
      _
    $region25: #{tpu_custom_call.1} parent=1 // pred_fallthru
      _
    // Predicated region
    $region26: #{tpu_custom_call.1} parent=1 // pred_check
      _
    $region27: #{tpu_custom_call.1} parent=1 // pred_check_branch
      %45 = sbr.rel (0) target = $region29
    $region28: #{tpu_custom_call.1} parent=1 // pred_region
      _
    $region29: #{tpu_custom_call.1} parent=1 // pred_fallthru
      _
    // Predicated region
    $region30: #{tpu_custom_call.1} parent=1 // pred_check
      _
    $region31: #{tpu_custom_call.1} parent=1 // pred_check_branch
      %47 = sbr.rel (0) target = $region33
    $region32: #{tpu_custom_call.1} parent=1 // pred_region
      _
    $region33: #{tpu_custom_call.1} parent=1 // pred_fallthru
      _
    // Predicated region
    $region34: #{tpu_custom_call.1} parent=1 // pred_check
      _
    $region35: #{tpu_custom_call.1} parent=1 // pred_check_branch
      %49 = sbr.rel (0) target = $region37
    $region36: #{tpu_custom_call.1} parent=1 // pred_region
      %50 = dma.done [#allocation3], 128
    $region37: #{tpu_custom_call.1} parent=1 // pred_fallthru
      _
    // Predicated region
    $region38: #{tpu_custom_call.1} parent=1 // pred_check
      _
    $region39: #{tpu_custom_call.1} parent=1 // pred_check_branch
      %52 = sbr.rel (0) target = $region41
    $region40: #{tpu_custom_call.1} parent=1 // pred_region
      %53 = dma.done [#allocation6], 128
    $region41: #{tpu_custom_call.1} parent=1 // pred_fallthru
      _
    %v54 = vld [vmem:[#allocation2] sm:$0xff]
    %v55 = vld [vmem:[#allocation5] sm:$0xff]
    %v56 = vld [vmem:[%s2] sm:$0xff]
    %v57 = vld [vmem:[%s2 + $0x8] sm:$0xff]
    %v58 = vld [vmem:[%s3] sm:$0x1]
    %v60 = vlaneseq
    %v61 = vshrl.u32 %v60, 7
    %v62 = vsub.s32 0, %v61
    %v63 = vrot.slane %v58, %v62
    %vm65 = vcmask 130048
    %v67 = vsel %vm65, %v54, 0
    %69 = vmatprep.subr.mxu0 0.0
    %70 = vmatpush1.msra.mxu0 %v56
    %71 = vmatprep.subr.mxu0 0.0
    %72 = vmatpush1.msra.mxu0 %v57
    %73 = vmatprep.subr.mxu0 0.0
    %74 = vmatpush1.msra.mxu0 0.0
    %75 = vmatprep.subr.mxu0 0.0
    %76 = vmatpush1.msra.mxu0 0.0
    %77 = vmatprep.subr.mxu0 0.0
    %78 = vmatpush1.msra.mxu0 0.0
    %79 = vmatprep.subr.mxu0 0.0
    %80 = vmatpush1.msra.mxu0 0.0
    %81 = vmatprep.subr.mxu0 0.0
    %82 = vmatpush1.msra.mxu0 0.0
    %83 = vmatprep.subr.mxu0 0.0
    %84 = vmatpush1.msra.mxu0 0.0
    %85 = vmatprep.subr.mxu0 0.0
    %86 = vmatpush1.msra.mxu0 0.0
    %87 = vmatprep.subr.mxu0 0.0
    %88 = vmatpush1.msra.mxu0 0.0
    %89 = vmatprep.subr.mxu0 0.0
    %90 = vmatpush1.msra.mxu0 0.0
    %91 = vmatprep.subr.mxu0 0.0
    %92 = vmatpush1.msra.mxu0 0.0
    %93 = vmatprep.subr.mxu0 0.0
    %94 = vmatpush1.msra.mxu0 0.0
    %95 = vmatprep.subr.mxu0 0.0
    %96 = vmatpush1.msra.mxu0 0.0
    %97 = vmatprep.subr.mxu0 0.0
    %98 = vmatpush1.msra.mxu0 0.0
    %99 = vmatprep.subr.mxu0 0.0
    %100 = vmatpush1.msra.mxu0 0.0
    %101 = vmatprep.subr.mxu0 0.0
    %102 = vmatpush1.msra.mxu0 0.0
    %103 = vmatprep.subr.mxu0 0.0
    %104 = vmatpush1.msra.mxu0 0.0
    %105 = vmatprep.subr.mxu0 0.0
    %106 = vmatpush1.msra.mxu0 0.0
    %107 = vmatprep.subr.mxu0 0.0
    %108 = vmatpush1.msra.mxu0 0.0
    %109 = vmatprep.subr.mxu0 0.0
    %110 = vmatpush1.msra.mxu0 0.0
    %111 = vmatprep.subr.mxu0 0.0
    %112 = vmatpush1.msra.mxu0 0.0
    %113 = vmatprep.subr.mxu0 0.0
    %114 = vmatpush1.msra.mxu0 0.0
    %115 = vmatprep.subr.mxu0 0.0
    %116 = vmatpush1.msra.mxu0 0.0
    %117 = vmatprep.subr.mxu0 0.0
    %118 = vmatpush1.msra.mxu0 0.0
    %119 = vmatprep.subr.mxu0 0.0
    %120 = vmatpush1.msra.mxu0 0.0
    %121 = vmatprep.subr.mxu0 0.0
    %122 = vmatpush1.msra.mxu0 0.0
    %123 = vmatprep.subr.mxu0 0.0
    %124 = vmatpush1.msra.mxu0 0.0
    %125 = vmatprep.subr.mxu0 0.0
    %126 = vmatpush1.msra.mxu0 0.0
    %127 = vmatprep.subr.mxu0 0.0
    %128 = vmatpush1.msra.mxu0 0.0
    %129 = vmatprep.subr.mxu0 0.0
    %130 = vmatpush1.msra.mxu0 0.0
    %131 = vmatprep.subr.mxu0 0.0
    %132 = vmatpush1.msra.mxu0 0.0
    %133 = vmatprep.mubr.f32.mxu0 0.0
    %134 = vmatmul.mubr.f32.gmra.mrb[0].mxu0 %v67
    %v135 = vpop.f32.mrb[0].mxu0
    %v136 = vadd.f32 %v63, %v135
    %v137 = vpop.f32.mrb[0].mxu0
    %138 = vdwg.mxu0
    %v139 = vmax.f32 %v136, 0.0
    %v140 = vld [vmem:[%s4] sm:$0xff]
    %v141 = vld [vmem:[%s4 + $0x8] sm:$0xff]
    %v142 = vld [vmem:[%s4 + $0x10] sm:$0xff]
    %v143 = vld [vmem:[%s4 + $0x18] sm:$0xff]
    %v144 = vld [vmem:[%s5] sm:$0x1]
    %v146 = vlaneseq
    %v147 = vshrl.u32 %v146, 7
    %v148 = vsub.s32 0, %v147
    %v149 = vrot.slane %v144, %v148
    %vm151 = vcmask 261120
    %v153 = vsel %vm151, %v139, 0
    %155 = vmatprep.subr.mxu0 0.0
    %156 = vmatpush1.msra.mxu0 %v140
    %157 = vmatprep.subr.mxu0 0.0
    %158 = vmatpush1.msra.mxu0 %v141
    %159 = vmatprep.subr.mxu0 0.0
    %160 = vmatpush1.msra.mxu0 %v142
    %161 = vmatprep.subr.mxu0 0.0
    %162 = vmatpush1.msra.mxu0 %v143
    %163 = vmatprep.subr.mxu0 0.0
    %164 = vmatpush1.msra.mxu0 0.0
    %165 = vmatprep.subr.mxu0 0.0
    %166 = vmatpush1.msra.mxu0 0.0
    %167 = vmatprep.subr.mxu0 0.0
    %168 = vmatpush1.msra.mxu0 0.0
    %169 = vmatprep.subr.mxu0 0.0
    %170 = vmatpush1.msra.mxu0 0.0
    %171 = vmatprep.subr.mxu0 0.0
    %172 = vmatpush1.msra.mxu0 0.0
    %173 = vmatprep.subr.mxu0 0.0
    %174 = vmatpush1.msra.mxu0 0.0
    %175 = vmatprep.subr.mxu0 0.0
    %176 = vmatpush1.msra.mxu0 0.0
    %177 = vmatprep.subr.mxu0 0.0
    %178 = vmatpush1.msra.mxu0 0.0
    %179 = vmatprep.subr.mxu0 0.0
    %180 = vmatpush1.msra.mxu0 0.0
    %181 = vmatprep.subr.mxu0 0.0
    %182 = vmatpush1.msra.mxu0 0.0
    %183 = vmatprep.subr.mxu0 0.0
    %184 = vmatpush1.msra.mxu0 0.0
    %185 = vmatprep.subr.mxu0 0.0
    %186 = vmatpush1.msra.mxu0 0.0
    %187 = vmatprep.subr.mxu0 0.0
    %188 = vmatpush1.msra.mxu0 0.0
    %189 = vmatprep.subr.mxu0 0.0
    %190 = vmatpush1.msra.mxu0 0.0
    %191 = vmatprep.subr.mxu0 0.0
    %192 = vmatpush1.msra.mxu0 0.0
    %193 = vmatprep.subr.mxu0 0.0
    %194 = vmatpush1.msra.mxu0 0.0
    %195 = vmatprep.subr.mxu0 0.0
    %196 = vmatpush1.msra.mxu0 0.0
    %197 = vmatprep.subr.mxu0 0.0
    %198 = vmatpush1.msra.mxu0 0.0
    %199 = vmatprep.subr.mxu0 0.0
    %200 = vmatpush1.msra.mxu0 0.0
    %201 = vmatprep.subr.mxu0 0.0
    %202 = vmatpush1.msra.mxu0 0.0
    %203 = vmatprep.subr.mxu0 0.0
    %204 = vmatpush1.msra.mxu0 0.0
    %205 = vmatprep.subr.mxu0 0.0
    %206 = vmatpush1.msra.mxu0 0.0
    %207 = vmatprep.subr.mxu0 0.0
    %208 = vmatpush1.msra.mxu0 0.0
    %209 = vmatprep.subr.mxu0 0.0
    %210 = vmatpush1.msra.mxu0 0.0
    %211 = vmatprep.subr.mxu0 0.0
    %212 = vmatpush1.msra.mxu0 0.0
    %213 = vmatprep.subr.mxu0 0.0
    %214 = vmatpush1.msra.mxu0 0.0
    %215 = vmatprep.subr.mxu0 0.0
    %216 = vmatpush1.msra.mxu0 0.0
    %217 = vmatprep.subr.mxu0 0.0
    %218 = vmatpush1.msra.mxu0 0.0
    %219 = vmatprep.mubr.f32.mxu0 0.0
    %220 = vmatmul.mubr.f32.gmra.mrb[0].mxu0 %v153
    %v221 = vpop.f32.mrb[0].mxu0
    %v222 = vadd.f32 %v149, %v221
    %v223 = vpop.f32.mrb[0].mxu0
    %224 = vdwg.mxu0
    %v225 = vmax.f32 %v222, 0.0
    %v226 = vld [vmem:[%s6] sm:$0xff]
    %v227 = vld [vmem:[%s6 + $0x8] sm:$0xff]
    %v228 = vld [vmem:[%s6 + $0x10] sm:$0xff]
    %v229 = vld [vmem:[%s6 + $0x18] sm:$0xff]
    %v230 = vld [vmem:[%s7] sm:$0x1]
    %v232 = vlaneseq
    %v233 = vshrl.u32 %v232, 7
    %v234 = vsub.s32 0, %v233
    %v235 = vrot.slane %v230, %v234
    %v238 = vsel %vm151, %v225, 0
    %240 = vmatprep.subr.mxu0 0.0
    %241 = vmatpush1.msra.mxu0 %v226
    %242 = vmatprep.subr.mxu0 0.0
    %243 = vmatpush1.msra.mxu0 %v227
    %244 = vmatprep.subr.mxu0 0.0
    %245 = vmatpush1.msra.mxu0 %v228
    %246 = vmatprep.subr.mxu0 0.0
    %247 = vmatpush1.msra.mxu0 %v229
    %248 = vmatprep.subr.mxu0 0.0
    %249 = vmatpush1.msra.mxu0 0.0
    %250 = vmatprep.subr.mxu0 0.0
    %251 = vmatpush1.msra.mxu0 0.0
    %252 = vmatprep.subr.mxu0 0.0
    %253 = vmatpush1.msra.mxu0 0.0
    %254 = vmatprep.subr.mxu0 0.0
    %255 = vmatpush1.msra.mxu0 0.0
    %256 = vmatprep.subr.mxu0 0.0
    %257 = vmatpush1.msra.mxu0 0.0
    %258 = vmatprep.subr.mxu0 0.0
    %259 = vmatpush1.msra.mxu0 0.0
    %260 = vmatprep.subr.mxu0 0.0
    %261 = vmatpush1.msra.mxu0 0.0
    %262 = vmatprep.subr.mxu0 0.0
    %263 = vmatpush1.msra.mxu0 0.0
    %264 = vmatprep.subr.mxu0 0.0
    %265 = vmatpush1.msra.mxu0 0.0
    %266 = vmatprep.subr.mxu0 0.0
    %267 = vmatpush1.msra.mxu0 0.0
    %268 = vmatprep.subr.mxu0 0.0
    %269 = vmatpush1.msra.mxu0 0.0
    %270 = vmatprep.subr.mxu0 0.0
    %271 = vmatpush1.msra.mxu0 0.0
    %272 = vmatprep.subr.mxu0 0.0
    %273 = vmatpush1.msra.mxu0 0.0
    %274 = vmatprep.subr.mxu0 0.0
    %275 = vmatpush1.msra.mxu0 0.0
    %276 = vmatprep.subr.mxu0 0.0
    %277 = vmatpush1.msra.mxu0 0.0
    %278 = vmatprep.subr.mxu0 0.0
    %279 = vmatpush1.msra.mxu0 0.0
    %280 = vmatprep.subr.mxu0 0.0
    %281 = vmatpush1.msra.mxu0 0.0
    %282 = vmatprep.subr.mxu0 0.0
    %283 = vmatpush1.msra.mxu0 0.0
    %284 = vmatprep.subr.mxu0 0.0
    %285 = vmatpush1.msra.mxu0 0.0
    %286 = vmatprep.subr.mxu0 0.0
    %287 = vmatpush1.msra.mxu0 0.0
    %288 = vmatprep.subr.mxu0 0.0
    %289 = vmatpush1.msra.mxu0 0.0
    %290 = vmatprep.subr.mxu0 0.0
    %291 = vmatpush1.msra.mxu0 0.0
    %292 = vmatprep.subr.mxu0 0.0
    %293 = vmatpush1.msra.mxu0 0.0
    %294 = vmatprep.subr.mxu0 0.0
    %295 = vmatpush1.msra.mxu0 0.0
    %296 = vmatprep.subr.mxu0 0.0
    %297 = vmatpush1.msra.mxu0 0.0
    %298 = vmatprep.subr.mxu0 0.0
    %299 = vmatpush1.msra.mxu0 0.0
    %300 = vmatprep.subr.mxu0 0.0
    %301 = vmatpush1.msra.mxu0 0.0
    %302 = vmatprep.subr.mxu0 0.0
    %303 = vmatpush1.msra.mxu0 0.0
    %304 = vmatprep.mubr.f32.mxu0 0.0
    %305 = vmatmul.mubr.f32.gmra.mrb[0].mxu0 %v238
    %v306 = vpop.f32.mrb[0].mxu0
    %v307 = vadd.f32 %v235, %v306
    %v308 = vpop.f32.mrb[0].mxu0
    %309 = vdwg.mxu0
    %v310 = vtanh.pop %v307
    %v311 = vadd.f32 %v310, 1.0
    %v312 = vmul.f32 %v311, 11.0
    %v313 = vadd.f32 %v312, -20.0
    %v314 = vmul.f32 %v313, 1.442695
    %v315 = vpow.pop %v314
    %317 = vrot.lane.b32.xlu0 %v315, 120
    %v318 = vpop.permute.xlu0 %317
    %v320 = vmul.f32 %v55, %v318
    %v321 = vadd.f32 %v307, %v320
    %v322 = vtanh.pop %v321
    %v323 = vmul.f32 %v55, %v55
    %v324 = vmul.f32 %v313, 2.0
    %326 = vrot.lane.b32.xlu0 %v324, 120
    %v327 = vpop.permute.xlu0 %326
    %v329 = vadd.f32 %v323, %v327
    %v330 = vadd.f32 %v329, 1.837877
    %v331 = vmul.f32 %v330, -0.5
    %v332 = vmul.f32 %v322, %v322
    %v333 = vsub.f32 1.0, %v332
    %v334 = vmax.f32 %v333, 0.0
    %v335 = vmin.f32 %v334, 1.0
    %v336 = vadd.f32 %v335, 1e-06
    %v337 = vlog2.pop %v336
    %v338 = vmul.f32 %v337, 0.6931472
    %v339 = vsub.f32 %v331, %v338
    %vm340 = vcmask 64512
    %v341 = vsel %vm340, %v339, 0.0
    %342 = vadd.xlane.f32.xlu0 %v341
    %v343 = vpop.xlane.xlu0 %342
    %345 = vrot.lane.b32.xlu0 %v322, 8
    %v346 = vpop.permute.xlu0 %345
    %v348 = vsel %vm340, %v310, %v346
    %v349 = vsel %vm65, %v348, %v343
    %vm350 = vcmask 138240
    %v351 = vsel %vm350, %v349, 0.0
    %vm352 = vcmask 195584
    %353 = vst.msk [vmem:[#allocation7] sm:$0xff] %vm352, %v351
    // Predicated region
    $region42: #{tpu_custom_call.1} parent=1 // pred_check
      _
    $region43: #{tpu_custom_call.1} parent=1 // pred_check_branch
      %355 = sbr.rel (0) target = $region45
    $region44: #{tpu_custom_call.1} parent=1 // pred_region
      %s357 = ssub.s32 128, 128
      %358 = vsyncadd [#allocation4], %s357
      %s360 = sshll.u32 [#allocation7], 4
      %s361 = int_to_ptr.vmem [resolvable:$true] %s360
      %363 = dma.vmem_to_hbm [thread:$0]  %s361, 128, %s8, [#allocation4]
    $region45: #{tpu_custom_call.1} parent=1 // pred_fallthru
      _
    // Predicated region
    $region46: #{tpu_custom_call.1} parent=1 // pred_check
      _
    $region47: #{tpu_custom_call.1} parent=1 // pred_check_branch
      %365 = sbr.rel (0) target = $region49
    $region48: #{tpu_custom_call.1} parent=1 // pred_region
      %366 = dma.done [#allocation4], 128
    $region49: #{tpu_custom_call.1} parent=1 // pred_fallthru
      _
    %367 = vsyncpa [#allocation3], 1
    %368 = vsyncpa [#allocation6], 1
    %369 = vsyncpa [#allocation4], 1

</llo_original>
